<compile_context>
chip_gen: v5e
topology: v5e:2x2
jax: 0.10.0
libtpu: 0.0.40
codegen_flags: <defaults>
</compile_context>

<pallas_src>
import functools

import jax
import jax.numpy as jnp
from jax.experimental import pallas as pl
from jax.experimental.pallas import tpu as pltpu


def _round_up(n: int, m: int) -> int:
    return ((n + m - 1) // m) * m


def _cdiv(a: int, b: int) -> int:
    return (a + b - 1) // b


def _mlp_kernel(x_ref, w1_ref, w2_ref, wb_ref, o_ref, *, sub_tiles):
    """One batch tile of the 3-layer MLP, feature-major layout, f32 end-to-end.

    x_ref : [S, TB]  f32   activations (batch on the 128-lane axis)
    w1_ref: [H, S]   f32   fc1 weight (PyTorch [out, in] layout), resident
    w2_ref: [H, H]   f32   fc2 weight, resident
    wb_ref: [H, 4]   f32   packed: col0=b1, col1=b2, col2=w3 (column), col3=b3
    o_ref : [1, TB]  f32   value output (lane-dense row)
    """
    x = x_ref[...]                       # [S, TB]
    w1 = w1_ref[...]                     # [H, S]
    w2 = w2_ref[...]                     # [H, H]
    wb = wb_ref[...]                     # [H, 4]
    b1, b2, w3c = wb[:, 0:1], wb[:, 1:2], wb[:, 2:3]
    b3 = wb[0:1, 3:4]

    state_dim, tb = x.shape
    sub = tb // sub_tiles

    # Stage 1 — fc1: K = state_dim is tiny (3), so do it as rank-1
    # multiply-adds on the VPU instead of wasting an MXU pass. One independent
    # copy per sub-tile so stage 2 of sub-tile n can overlap stage 1 of n+1.
    h1s = []
    for t in range(sub_tiles):
        xt = x[:, t * sub:(t + 1) * sub]
        acc = b1 + w1[:, 0:1] * xt[0:1, :]                     # [H, sub]
        for k in range(1, state_dim):                          # unrolled (tiny)
            acc = acc + w1[:, k:k + 1] * xt[k:k + 1, :]
        h1s.append(jnp.maximum(acc, 0.0))

    # Stage 2 — fc2 on the MXU (f32 operands, f32 accumulation). Sub-tiles are
    # independent, so the LLO scheduler may interleave MXU and VPU work.
    h2s = [
        jnp.maximum(jnp.dot(w2, h1, preferred_element_type=jnp.float32) + b2, 0.0)
        for h1 in h1s
    ]

    # Stage 3 — fc3 (M = 1): VPU multiply + cross-sublane reduce instead of a
    # 1-useful-row MXU matmul; writes a lane-dense [1, sub] strip.
    for t in range(sub_tiles):
        out = jnp.sum(h2s[t] * w3c, axis=0, keepdims=True) + b3   # [1, sub]
        o_ref[:, t * sub:(t + 1) * sub] = out.astype(o_ref.dtype)


def prepare_params(params):
    """One-time packing of call-invariant operands (hoisted out of forward)."""
    w1, b1 = params["w1"], params["b1"]          # [H, S], [H]
    w2, b2 = params["w2"], params["b2"]          # [H, H], [H]
    w3, b3 = params["w3"], params["b3"]          # [1, H], [1]
    H = w1.shape[0]
    # Single [H, 4] slab: one resident DMA instead of four tiny ones.
    wb = jnp.concatenate(
        [b1[:, None], b2[:, None], w3.reshape(H, 1),
         jnp.broadcast_to(b3.reshape(1, 1), (H, 1))],
        axis=1).astype(jnp.float32)
    return {"w1": w1.astype(jnp.float32),
            "w2": w2.astype(jnp.float32),
            "wb": wb}


def value_network_forward(x, prepared, *, batch_tile=2048):
    """Fused ValueNetwork forward. x: [B, state_dim] f32 -> [B, 1] f32."""
    w1, w2, wb = prepared["w1"], prepared["w2"], prepared["wb"]
    B, S = x.shape
    H = w1.shape[0]

    # Lane tile: defensively round the user value up to a multiple of 128;
    # never bigger than needed; and when B spans >1 tile, force >=2 grid steps
    # so the 'parallel' batch axis gives v7x's second TensorCore real work.
    batch_tile = _round_up(max(int(batch_tile), 128), 128)
    TB = min(batch_tile, _round_up(_cdiv(B, 2), 128), _round_up(B, 128))
    B_pad = _round_up(B, TB)

    # Two independent in-kernel sub-tiles whenever the tile splits cleanly.
    sub_tiles = 2 if TB % 256 == 0 else 1

    # Feature-major layout: batch on the lane axis, zero-padded to B_pad.
    # (Known, low-priority per-call overhead: pass x as [S, B] upstream to
    # remove this extra HBM round trip.)
    x_t = jnp.pad(x.T, ((0, 0), (0, B_pad - B)))               # [S, B_pad]

    # Scoped-VMEM budget derived from the tile footprint: keeps very large
    # tiles compiling on v5e's 16 MiB default while staying below v7x's
    # 64 MiB physical VMEM.
    vmem_bytes = 4 * (2 * S * TB + 2 * TB                 # pipelined x / out
                      + 2 * (H * S + H * H + 4 * H)       # resident weights
                      + 10 * H * TB)                      # in-kernel temporaries
    vmem_limit = min(max(vmem_bytes, 32 << 20), 60 << 20)

    grid = (B_pad // TB,)
    out = pl.pallas_call(
        functools.partial(_mlp_kernel, sub_tiles=sub_tiles),
        out_shape=jax.ShapeDtypeStruct((1, B_pad), jnp.float32),
        grid_spec=pltpu.PrefetchScalarGridSpec(
            num_scalar_prefetch=0,
            grid=grid,
            in_specs=[
                pl.BlockSpec((S, TB), lambda i: (0, i)),   # x tile (pipelined)
                pl.BlockSpec((H, S), lambda i: (0, 0)),    # w1 (resident)
                pl.BlockSpec((H, H), lambda i: (0, 0)),    # w2 (resident)
                pl.BlockSpec((H, 4), lambda i: (0, 0)),    # biases + w3 column
            ],
            out_specs=pl.BlockSpec((1, TB), lambda i: (0, i)),  # lane-dense out
        ),
        compiler_params=pltpu.CompilerParams(
            dimension_semantics=("parallel",),   # shard batch tiles over TCs
            vmem_limit_bytes=vmem_limit),
    )(x_t, w1, w2, wb)

    # Padded lanes carry bias-propagated garbage — slice before any use.
    return out[0, :B][:, None]                              # [B, 1]


def init_params(key, state_dim, hidden_dim=128):
    """nn.Linear-style init; weights in PyTorch [out_features, in_features]."""
    ks = jax.random.split(key, 6)

    def lin(kw, kb, fan_in, fan_out):
        bound = 1.0 / jnp.sqrt(float(fan_in))
        w = jax.random.uniform(kw, (fan_out, fan_in), jnp.float32, -bound, bound)
        b = jax.random.uniform(kb, (fan_out,), jnp.float32, -bound, bound)
        return w, b

    w1, b1 = lin(ks[0], ks[1], state_dim, hidden_dim)
    w2, b2 = lin(ks[2], ks[3], hidden_dim, hidden_dim)
    w3, b3 = lin(ks[4], ks[5], hidden_dim, 1)
    return {"w1": w1, "b1": b1, "w2": w2, "b2": b2, "w3": w3, "b3": b3}


def _reference(x, p):
    h = jnp.maximum(x @ p["w1"].T + p["b1"], 0.0)
    h = jnp.maximum(h @ p["w2"].T + p["b2"], 0.0)
    return h @ p["w3"].T + p["b3"]


if __name__ == "__main__":
    key = jax.random.PRNGKey(0)
    k_x, k_p = jax.random.split(key)

    state_dim = 3       # Pendulum-v1 observation dim
    hidden_dim = 128    # module default
    batch = 8

    x = jax.random.normal(k_x, (batch, state_dim), jnp.float32)
    params = init_params(k_p, state_dim, hidden_dim)
    prepared = prepare_params(params)        # one-time packing, hoisted

    fwd = jax.jit(value_network_forward)
    out = jax.block_until_ready(fwd(x, prepared))

    ref = _reference(x, params)
    assert out.shape == (batch, 1)
    # f32 end-to-end (MXU f32 accumulate) -> tight tolerance with some margin.
    assert jnp.allclose(out, ref, atol=2e-3, rtol=2e-3), "mismatch vs reference"

    print("KERNEL_OK")
</pallas_src>

<mosaic_0001>
module attributes {stable_mosaic.version = 11 : i64} {
  func.func @_mlp_kernel(%arg0: i32, %arg1: memref<3x128xf32, #tpu.memory_space<vmem>>, %arg2: memref<128x3xf32, #tpu.memory_space<vmem>>, %arg3: memref<128x128xf32, #tpu.memory_space<vmem>>, %arg4: memref<128x4xf32, #tpu.memory_space<vmem>>, %arg5: memref<1x128xf32, #tpu.memory_space<vmem>>) attributes {dimension_semantics = [#tpu.dimension_semantics<parallel>], iteration_bounds = array<i64: 1>, scalar_prefetch = 0 : i64, scratch_operands = 0 : i64, tpu.core_type = #tpu.core_type<tc>, window_params = [{transform_indices = @transform_0, window_bounds = array<i64: 3, 128>}, {pipeline_mode = #tpu.pipeline_mode<synchronous>, transform_indices = @transform_1, window_bounds = array<i64: 128, 3>}, {pipeline_mode = #tpu.pipeline_mode<synchronous>, transform_indices = @transform_2, window_bounds = array<i64: 128, 128>}, {pipeline_mode = #tpu.pipeline_mode<synchronous>, transform_indices = @transform_3, window_bounds = array<i64: 128, 4>}, {transform_indices = @transform_4, window_bounds = array<i64: 1, 128>}]} {
    %c0 = arith.constant 0 : index
    %c0_0 = arith.constant 0 : index
    %0 = vector.load %arg1[%c0, %c0_0] : memref<3x128xf32, #tpu.memory_space<vmem>>, vector<3x128xf32>
    %c0_1 = arith.constant 0 : index
    %c0_2 = arith.constant 0 : index
    %1 = vector.load %arg2[%c0_1, %c0_2] : memref<128x3xf32, #tpu.memory_space<vmem>>, vector<128x3xf32>
    %c0_3 = arith.constant 0 : index
    %c0_4 = arith.constant 0 : index
    %2 = vector.load %arg3[%c0_3, %c0_4] : memref<128x128xf32, #tpu.memory_space<vmem>>, vector<128x128xf32>
    %c0_5 = arith.constant 0 : index
    %c0_6 = arith.constant 0 : index
    %3 = vector.load %arg4[%c0_5, %c0_6] : memref<128x4xf32, #tpu.memory_space<vmem>>, vector<128x4xf32>
    %4 = vector.extract_strided_slice %3 {offsets = [0, 0], sizes = [128, 1], strides = [1, 1]} : vector<128x4xf32> to vector<128x1xf32>
    %5 = vector.extract_strided_slice %3 {offsets = [0, 1], sizes = [128, 1], strides = [1, 1]} : vector<128x4xf32> to vector<128x1xf32>
    %6 = vector.extract_strided_slice %3 {offsets = [0, 2], sizes = [128, 1], strides = [1, 1]} : vector<128x4xf32> to vector<128x1xf32>
    %7 = vector.extract_strided_slice %3 {offsets = [0, 3], sizes = [1, 1], strides = [1, 1]} : vector<128x4xf32> to vector<1x1xf32>
    %8 = vector.extract_strided_slice %1 {offsets = [0, 0], sizes = [128, 1], strides = [1, 1]} : vector<128x3xf32> to vector<128x1xf32>
    %9 = vector.extract_strided_slice %0 {offsets = [0, 0], sizes = [1, 128], strides = [1, 1]} : vector<3x128xf32> to vector<1x128xf32>
    %10 = vector.broadcast %8 : vector<128x1xf32> to vector<128x128xf32>
    %11 = vector.broadcast %9 : vector<1x128xf32> to vector<128x128xf32>
    %12 = arith.mulf %10, %11 : vector<128x128xf32>
    %13 = vector.broadcast %4 : vector<128x1xf32> to vector<128x128xf32>
    %14 = arith.addf %13, %12 : vector<128x128xf32>
    %15 = vector.extract_strided_slice %1 {offsets = [0, 1], sizes = [128, 1], strides = [1, 1]} : vector<128x3xf32> to vector<128x1xf32>
    %16 = vector.extract_strided_slice %0 {offsets = [1, 0], sizes = [1, 128], strides = [1, 1]} : vector<3x128xf32> to vector<1x128xf32>
    %17 = vector.broadcast %15 : vector<128x1xf32> to vector<128x128xf32>
    %18 = vector.broadcast %16 : vector<1x128xf32> to vector<128x128xf32>
    %19 = arith.mulf %17, %18 : vector<128x128xf32>
    %20 = arith.addf %14, %19 : vector<128x128xf32>
    %21 = vector.extract_strided_slice %1 {offsets = [0, 2], sizes = [128, 1], strides = [1, 1]} : vector<128x3xf32> to vector<128x1xf32>
    %22 = vector.extract_strided_slice %0 {offsets = [2, 0], sizes = [1, 128], strides = [1, 1]} : vector<3x128xf32> to vector<1x128xf32>
    %23 = vector.broadcast %21 : vector<128x1xf32> to vector<128x128xf32>
    %24 = vector.broadcast %22 : vector<1x128xf32> to vector<128x128xf32>
    %25 = arith.mulf %23, %24 : vector<128x128xf32>
    %26 = arith.addf %20, %25 : vector<128x128xf32>
    %cst = arith.constant 0.000000e+00 : f32
    %27 = vector.broadcast %cst : f32 to vector<128x128xf32>
    %28 = arith.maximumf %26, %27 : vector<128x128xf32>
    %cst_7 = arith.constant dense<0.000000e+00> : vector<128x128xf32>
    %29 = tpu.matmul %2, %28, %cst_7 {dimension_numbers = #tpu.dot_dimension_numbers<[1], [0], [0], [1], [0, 0, 1, 1], [], []>} : vector<128x128xf32>, vector<128x128xf32>, vector<128x128xf32> -> vector<128x128xf32>
    %30 = vector.broadcast %5 : vector<128x1xf32> to vector<128x128xf32>
    %31 = arith.addf %29, %30 : vector<128x128xf32>
    %cst_8 = arith.constant 0.000000e+00 : f32
    %32 = vector.broadcast %cst_8 : f32 to vector<128x128xf32>
    %33 = arith.maximumf %31, %32 : vector<128x128xf32>
    %34 = vector.broadcast %6 : vector<128x1xf32> to vector<128x128xf32>
    %35 = arith.mulf %33, %34 : vector<128x128xf32>
    %cst_9 = arith.constant dense<0.000000e+00> : vector<128xf32>
    %36 = vector.multi_reduction <add>, %35, %cst_9 [0] : vector<128x128xf32> to vector<128xf32>
    %37 = vector.shape_cast %36 : vector<128xf32> to vector<1x128xf32>
    %38 = vector.broadcast %7 : vector<1x1xf32> to vector<1x128xf32>
    %39 = arith.addf %37, %38 : vector<1x128xf32>
    %c0_10 = arith.constant 0 : index
    %c0_11 = arith.constant 0 : index
    %40 = vector.load %arg5[%c0_10, %c0_11] : memref<1x128xf32, #tpu.memory_space<vmem>>, vector<1x128xf32>
    tpu.vector_store %arg5[%c0_10, %c0_11], %39 {strides = array<i32>} : memref<1x128xf32, #tpu.memory_space<vmem>>, vector<1x128xf32>,
    return
  }
  func.func @transform_0(%arg0: i32) -> (i32, i32) {
    %c0_i32 = arith.constant 0 : i32
    %c0_i32_0 = arith.constant 0 : i32
    return %c0_i32, %arg0 : i32, i32
  }
  func.func @transform_1(%arg0: i32) -> (i32, i32) {
    %c0_i32 = arith.constant 0 : i32
    %c0_i32_0 = arith.constant 0 : i32
    %c0_i32_1 = arith.constant 0 : i32
    return %c0_i32, %c0_i32_0 : i32, i32
  }
  func.func @transform_2(%arg0: i32) -> (i32, i32) {
    %c0_i32 = arith.constant 0 : i32
    %c0_i32_0 = arith.constant 0 : i32
    %c0_i32_1 = arith.constant 0 : i32
    return %c0_i32, %c0_i32_0 : i32, i32
  }
  func.func @transform_3(%arg0: i32) -> (i32, i32) {
    %c0_i32 = arith.constant 0 : i32
    %c0_i32_0 = arith.constant 0 : i32
    %c0_i32_1 = arith.constant 0 : i32
    return %c0_i32, %c0_i32_0 : i32, i32
  }
  func.func @transform_4(%arg0: i32) -> (i32, i32) {
    %c0_i32 = arith.constant 0 : i32
    %c0_i32_0 = arith.constant 0 : i32
    return %c0_i32, %arg0 : i32, i32
  }
}

</mosaic_0001>

<llo_original>
// kernel: value_network_forward.1
$region0: #{value_network_forward.1}
  #allocation0 [shape = 'u32[]', space=smem, size = 0x4, offset = 0x4, fixed_abs, tag = 'smem constant byte address 0x4 - core index']
  #allocation1 [shape = 'u32[72,128]{1,0:T(1,128)}', space=vmem, size = 0x9000, scoped, tag = 'internal scratch']
  %s0 = inlined_call_operand.vmem [shape: f32[3,128], index: 0, kind: input, shape index: {}]
  %s1 = inlined_call_operand.vmem [shape: f32[128,3], index: 1, kind: input, shape index: {}]
  %s2 = inlined_call_operand.vmem [shape: f32[128,128], index: 2, kind: input, shape index: {}]
  %s3 = inlined_call_operand.vmem [shape: f32[128,4], index: 3, kind: input, shape index: {}]
  %s4 = inlined_call_operand.vmem [shape: f32[1,128], index: 4, kind: output, shape index: {}]
  %s5 = sld [smem:[#allocation0]]
  $region26: #{value_network_forward.1} parent=0
    _
  %s7 = ssub.s32 1, %s5
  %s8 = scalar_select 0, %s7, %s5
  // Predicated region
  $region2: #{value_network_forward.1} parent=0 // pred_check
    _
  $region3: #{value_network_forward.1} parent=0 // pred_check_branch
    %10 = sbr.rel (0) target = $region5
  $region4: #{value_network_forward.1} parent=0 // pred_region
    _
  $region5: #{value_network_forward.1} parent=0 // pred_fallthru
    _
  // Predicated region
  $region6: #{value_network_forward.1} parent=0 // pred_check
    _
  $region7: #{value_network_forward.1} parent=0 // pred_check_branch
    %12 = sbr.rel (0) target = $region9
  $region8: #{value_network_forward.1} parent=0 // pred_region
    _
  $region9: #{value_network_forward.1} parent=0 // pred_fallthru
    _
  // Predicated region
  $region10: #{value_network_forward.1} parent=0 // pred_check
    _
  $region11: #{value_network_forward.1} parent=0 // pred_check_branch
    %14 = sbr.rel (0) target = $region13
  $region12: #{value_network_forward.1} parent=0 // pred_region
    _
  $region13: #{value_network_forward.1} parent=0 // pred_fallthru
    _
  // Predicated region
  $region14: #{value_network_forward.1} parent=0 // pred_check
    _
  $region15: #{value_network_forward.1} parent=0 // pred_check_branch
    %16 = sbr.rel (0) target = $region17
  $region16: #{value_network_forward.1} parent=0 // pred_region
    _
  $region17: #{value_network_forward.1} parent=0 // pred_fallthru
    _
  %v17 = vld [vmem:[%s0] sm:$0x7]
  %v18 = vld [vmem:[%s1] sm:$0xff]
  %v19 = vld [vmem:[%s1 + $0x8] sm:$0xff]
  %v20 = vld [vmem:[%s1 + $0x10] sm:$0xff]
  %v21 = vld [vmem:[%s1 + $0x18] sm:$0xff]
  %v22 = vld [vmem:[%s1 + $0x20] sm:$0xff]
  %v23 = vld [vmem:[%s1 + $0x28] sm:$0xff]
  %v24 = vld [vmem:[%s1 + $0x30] sm:$0xff]
  %v25 = vld [vmem:[%s1 + $0x38] sm:$0xff]
  %v26 = vld [vmem:[%s1 + $0x40] sm:$0xff]
  %v27 = vld [vmem:[%s1 + $0x48] sm:$0xff]
  %v28 = vld [vmem:[%s1 + $0x50] sm:$0xff]
  %v29 = vld [vmem:[%s1 + $0x58] sm:$0xff]
  %v30 = vld [vmem:[%s1 + $0x60] sm:$0xff]
  %v31 = vld [vmem:[%s1 + $0x68] sm:$0xff]
  %v32 = vld [vmem:[%s1 + $0x70] sm:$0xff]
  %v33 = vld [vmem:[%s1 + $0x78] sm:$0xff]
  %v34 = vld [vmem:[%s2] sm:$0xff]
  %v35 = vld [vmem:[%s2 + $0x8] sm:$0xff]
  %v36 = vld [vmem:[%s2 + $0x10] sm:$0xff]
  %v37 = vld [vmem:[%s2 + $0x18] sm:$0xff]
  %v38 = vld [vmem:[%s2 + $0x20] sm:$0xff]
  %v39 = vld [vmem:[%s2 + $0x28] sm:$0xff]
  %v40 = vld [vmem:[%s2 + $0x30] sm:$0xff]
  %v41 = vld [vmem:[%s2 + $0x38] sm:$0xff]
  %v42 = vld [vmem:[%s2 + $0x40] sm:$0xff]
  %v43 = vld [vmem:[%s2 + $0x48] sm:$0xff]
  %v44 = vld [vmem:[%s2 + $0x50] sm:$0xff]
  %v45 = vld [vmem:[%s2 + $0x58] sm:$0xff]
  %v46 = vld [vmem:[%s2 + $0x60] sm:$0xff]
  %v47 = vld [vmem:[%s2 + $0x68] sm:$0xff]
  %v48 = vld [vmem:[%s2 + $0x70] sm:$0xff]
  %v49 = vld [vmem:[%s2 + $0x78] sm:$0xff]
  %v50 = vld [vmem:[%s3] sm:$0xff]
  %v51 = vld [vmem:[%s3 + $0x8] sm:$0xff]
  %v52 = vld [vmem:[%s3 + $0x10] sm:$0xff]
  %v53 = vld [vmem:[%s3 + $0x18] sm:$0xff]
  %v54 = vld [vmem:[%s3 + $0x20] sm:$0xff]
  %v55 = vld [vmem:[%s3 + $0x28] sm:$0xff]
  %v56 = vld [vmem:[%s3 + $0x30] sm:$0xff]
  %v57 = vld [vmem:[%s3 + $0x38] sm:$0xff]
  %v58 = vld [vmem:[%s3 + $0x40] sm:$0xff]
  %v59 = vld [vmem:[%s3 + $0x48] sm:$0xff]
  %v60 = vld [vmem:[%s3 + $0x50] sm:$0xff]
  %v61 = vld [vmem:[%s3 + $0x58] sm:$0xff]
  %v62 = vld [vmem:[%s3 + $0x60] sm:$0xff]
  %v63 = vld [vmem:[%s3 + $0x68] sm:$0xff]
  %v64 = vld [vmem:[%s3 + $0x70] sm:$0xff]
  %v65 = vld [vmem:[%s3 + $0x78] sm:$0xff]
  %67 = vset.pattern.permute.xlu0 0
  %68 = vperm.xlu0 %67, %v18
  %v69 = vpop.permute.xlu0 %68
  %72 = vset.pattern.permute.xlu0 0
  %73 = vperm.xlu0 %72, %v19
  %v74 = vpop.permute.xlu0 %73
  %77 = vset.pattern.permute.xlu0 0
  %78 = vperm.xlu0 %77, %v20
  %v79 = vpop.permute.xlu0 %78
  %82 = vset.pattern.permute.xlu0 0
  %83 = vperm.xlu0 %82, %v21
  %v84 = vpop.permute.xlu0 %83
  %87 = vset.pattern.permute.xlu0 0
  %88 = vperm.xlu0 %87, %v22
  %v89 = vpop.permute.xlu0 %88
  %92 = vset.pattern.permute.xlu0 0
  %93 = vperm.xlu0 %92, %v23
  %v94 = vpop.permute.xlu0 %93
  %97 = vset.pattern.permute.xlu0 0
  %98 = vperm.xlu0 %97, %v24
  %v99 = vpop.permute.xlu0 %98
  %102 = vset.pattern.permute.xlu0 0
  %103 = vperm.xlu0 %102, %v25
  %v104 = vpop.permute.xlu0 %103
  %107 = vset.pattern.permute.xlu0 0
  %108 = vperm.xlu0 %107, %v26
  %v109 = vpop.permute.xlu0 %108
  %112 = vset.pattern.permute.xlu0 0
  %113 = vperm.xlu0 %112, %v27
  %v114 = vpop.permute.xlu0 %113
  %117 = vset.pattern.permute.xlu0 0
  %118 = vperm.xlu0 %117, %v28
  %v119 = vpop.permute.xlu0 %118
  %122 = vset.pattern.permute.xlu0 0
  %123 = vperm.xlu0 %122, %v29
  %v124 = vpop.permute.xlu0 %123
  %127 = vset.pattern.permute.xlu0 0
  %128 = vperm.xlu0 %127, %v30
  %v129 = vpop.permute.xlu0 %128
  %132 = vset.pattern.permute.xlu0 0
  %133 = vperm.xlu0 %132, %v31
  %v134 = vpop.permute.xlu0 %133
  %137 = vset.pattern.permute.xlu0 0
  %138 = vperm.xlu0 %137, %v32
  %v139 = vpop.permute.xlu0 %138
  %142 = vset.pattern.permute.xlu0 0
  %143 = vperm.xlu0 %142, %v33
  %v144 = vpop.permute.xlu0 %143
  %v146 = vperm.slane %v17, 0
  %v147 = vmul.f32 %v69, %v146
  %v148 = vmul.f32 %v74, %v146
  %v149 = vmul.f32 %v79, %v146
  %v150 = vmul.f32 %v84, %v146
  %v151 = vmul.f32 %v89, %v146
  %v152 = vmul.f32 %v94, %v146
  %v153 = vmul.f32 %v99, %v146
  %v154 = vmul.f32 %v104, %v146
  %v155 = vmul.f32 %v109, %v146
  %v156 = vmul.f32 %v114, %v146
  %v157 = vmul.f32 %v119, %v146
  %v158 = vmul.f32 %v124, %v146
  %v159 = vmul.f32 %v129, %v146
  %v160 = vmul.f32 %v134, %v146
  %v161 = vmul.f32 %v139, %v146
  %v162 = vmul.f32 %v144, %v146
  %164 = vset.pattern.permute.xlu0 0
  %165 = vperm.xlu0 %164, %v50
  %v166 = vpop.permute.xlu0 %165
  %169 = vset.pattern.permute.xlu0 0
  %170 = vperm.xlu0 %169, %v51
  %v171 = vpop.permute.xlu0 %170
  %174 = vset.pattern.permute.xlu0 0
  %175 = vperm.xlu0 %174, %v52
  %v176 = vpop.permute.xlu0 %175
  %179 = vset.pattern.permute.xlu0 0
  %180 = vperm.xlu0 %179, %v53
  %v181 = vpop.permute.xlu0 %180
  %184 = vset.pattern.permute.xlu0 0
  %185 = vperm.xlu0 %184, %v54
  %v186 = vpop.permute.xlu0 %185
  %189 = vset.pattern.permute.xlu0 0
  %190 = vperm.xlu0 %189, %v55
  %v191 = vpop.permute.xlu0 %190
  %194 = vset.pattern.permute.xlu0 0
  %195 = vperm.xlu0 %194, %v56
  %v196 = vpop.permute.xlu0 %195
  %199 = vset.pattern.permute.xlu0 0
  %200 = vperm.xlu0 %199, %v57
  %v201 = vpop.permute.xlu0 %200
  %204 = vset.pattern.permute.xlu0 0
  %205 = vperm.xlu0 %204, %v58
  %v206 = vpop.permute.xlu0 %205
  %209 = vset.pattern.permute.xlu0 0
  %210 = vperm.xlu0 %209, %v59
  %v211 = vpop.permute.xlu0 %210
  %214 = vset.pattern.permute.xlu0 0
  %215 = vperm.xlu0 %214, %v60
  %v216 = vpop.permute.xlu0 %215
  %219 = vset.pattern.permute.xlu0 0
  %220 = vperm.xlu0 %219, %v61
  %v221 = vpop.permute.xlu0 %220
  %224 = vset.pattern.permute.xlu0 0
  %225 = vperm.xlu0 %224, %v62
  %v226 = vpop.permute.xlu0 %225
  %229 = vset.pattern.permute.xlu0 0
  %230 = vperm.xlu0 %229, %v63
  %v231 = vpop.permute.xlu0 %230
  %234 = vset.pattern.permute.xlu0 0
  %235 = vperm.xlu0 %234, %v64
  %v236 = vpop.permute.xlu0 %235
  %239 = vset.pattern.permute.xlu0 0
  %240 = vperm.xlu0 %239, %v65
  %v241 = vpop.permute.xlu0 %240
  %v243 = vadd.f32 %v166, %v147
  %v244 = vadd.f32 %v171, %v148
  %v245 = vadd.f32 %v176, %v149
  %v246 = vadd.f32 %v181, %v150
  %v247 = vadd.f32 %v186, %v151
  %v248 = vadd.f32 %v191, %v152
  %v249 = vadd.f32 %v196, %v153
  %v250 = vadd.f32 %v201, %v154
  %v251 = vadd.f32 %v206, %v155
  %v252 = vadd.f32 %v211, %v156
  %v253 = vadd.f32 %v216, %v157
  %v254 = vadd.f32 %v221, %v158
  %v255 = vadd.f32 %v226, %v159
  %v256 = vadd.f32 %v231, %v160
  %v257 = vadd.f32 %v236, %v161
  %v258 = vadd.f32 %v241, %v162
  %259 = vset.pattern.permute.xlu0 1
  %260 = vperm.xlu0 %259, %v18
  %v261 = vpop.permute.xlu0 %260
  %263 = vset.pattern.permute.xlu0 1
  %264 = vperm.xlu0 %263, %v19
  %v265 = vpop.permute.xlu0 %264
  %267 = vset.pattern.permute.xlu0 1
  %268 = vperm.xlu0 %267, %v20
  %v269 = vpop.permute.xlu0 %268
  %271 = vset.pattern.permute.xlu0 1
  %272 = vperm.xlu0 %271, %v21
  %v273 = vpop.permute.xlu0 %272
  %275 = vset.pattern.permute.xlu0 1
  %276 = vperm.xlu0 %275, %v22
  %v277 = vpop.permute.xlu0 %276
  %279 = vset.pattern.permute.xlu0 1
  %280 = vperm.xlu0 %279, %v23
  %v281 = vpop.permute.xlu0 %280
  %283 = vset.pattern.permute.xlu0 1
  %284 = vperm.xlu0 %283, %v24
  %v285 = vpop.permute.xlu0 %284
  %287 = vset.pattern.permute.xlu0 1
  %288 = vperm.xlu0 %287, %v25
  %v289 = vpop.permute.xlu0 %288
  %291 = vset.pattern.permute.xlu0 1
  %292 = vperm.xlu0 %291, %v26
  %v293 = vpop.permute.xlu0 %292
  %295 = vset.pattern.permute.xlu0 1
  %296 = vperm.xlu0 %295, %v27
  %v297 = vpop.permute.xlu0 %296
  %299 = vset.pattern.permute.xlu0 1
  %300 = vperm.xlu0 %299, %v28
  %v301 = vpop.permute.xlu0 %300
  %303 = vset.pattern.permute.xlu0 1
  %304 = vperm.xlu0 %303, %v29
  %v305 = vpop.permute.xlu0 %304
  %307 = vset.pattern.permute.xlu0 1
  %308 = vperm.xlu0 %307, %v30
  %v309 = vpop.permute.xlu0 %308
  %311 = vset.pattern.permute.xlu0 1
  %312 = vperm.xlu0 %311, %v31
  %v313 = vpop.permute.xlu0 %312
  %315 = vset.pattern.permute.xlu0 1
  %316 = vperm.xlu0 %315, %v32
  %v317 = vpop.permute.xlu0 %316
  %319 = vset.pattern.permute.xlu0 1
  %320 = vperm.xlu0 %319, %v33
  %v321 = vpop.permute.xlu0 %320
  %v323 = vperm.slane %v17, 1
  %v324 = vmul.f32 %v261, %v323
  %v325 = vmul.f32 %v265, %v323
  %v326 = vmul.f32 %v269, %v323
  %v327 = vmul.f32 %v273, %v323
  %v328 = vmul.f32 %v277, %v323
  %v329 = vmul.f32 %v281, %v323
  %v330 = vmul.f32 %v285, %v323
  %v331 = vmul.f32 %v289, %v323
  %v332 = vmul.f32 %v293, %v323
  %v333 = vmul.f32 %v297, %v323
  %v334 = vmul.f32 %v301, %v323
  %v335 = vmul.f32 %v305, %v323
  %v336 = vmul.f32 %v309, %v323
  %v337 = vmul.f32 %v313, %v323
  %v338 = vmul.f32 %v317, %v323
  %v339 = vmul.f32 %v321, %v323
  %v340 = vadd.f32 %v243, %v324
  %v341 = vadd.f32 %v244, %v325
  %v342 = vadd.f32 %v245, %v326
  %v343 = vadd.f32 %v246, %v327
  %v344 = vadd.f32 %v247, %v328
  %v345 = vadd.f32 %v248, %v329
  %v346 = vadd.f32 %v249, %v330
  %v347 = vadd.f32 %v250, %v331
  %v348 = vadd.f32 %v251, %v332
  %v349 = vadd.f32 %v252, %v333
  %v350 = vadd.f32 %v253, %v334
  %v351 = vadd.f32 %v254, %v335
  %v352 = vadd.f32 %v255, %v336
  %v353 = vadd.f32 %v256, %v337
  %v354 = vadd.f32 %v257, %v338
  %v355 = vadd.f32 %v258, %v339
  %356 = vset.pattern.permute.xlu0 2
  %357 = vperm.xlu0 %356, %v18
  %v358 = vpop.permute.xlu0 %357
  %360 = vset.pattern.permute.xlu0 2
  %361 = vperm.xlu0 %360, %v19
  %v362 = vpop.permute.xlu0 %361
  %364 = vset.pattern.permute.xlu0 2
  %365 = vperm.xlu0 %364, %v20
  %v366 = vpop.permute.xlu0 %365
  %368 = vset.pattern.permute.xlu0 2
  %369 = vperm.xlu0 %368, %v21
  %v370 = vpop.permute.xlu0 %369
  %372 = vset.pattern.permute.xlu0 2
  %373 = vperm.xlu0 %372, %v22
  %v374 = vpop.permute.xlu0 %373
  %376 = vset.pattern.permute.xlu0 2
  %377 = vperm.xlu0 %376, %v23
  %v378 = vpop.permute.xlu0 %377
  %380 = vset.pattern.permute.xlu0 2
  %381 = vperm.xlu0 %380, %v24
  %v382 = vpop.permute.xlu0 %381
  %384 = vset.pattern.permute.xlu0 2
  %385 = vperm.xlu0 %384, %v25
  %v386 = vpop.permute.xlu0 %385
  %388 = vset.pattern.permute.xlu0 2
  %389 = vperm.xlu0 %388, %v26
  %v390 = vpop.permute.xlu0 %389
  %392 = vset.pattern.permute.xlu0 2
  %393 = vperm.xlu0 %392, %v27
  %v394 = vpop.permute.xlu0 %393
  %396 = vset.pattern.permute.xlu0 2
  %397 = vperm.xlu0 %396, %v28
  %v398 = vpop.permute.xlu0 %397
  %400 = vset.pattern.permute.xlu0 2
  %401 = vperm.xlu0 %400, %v29
  %v402 = vpop.permute.xlu0 %401
  %404 = vset.pattern.permute.xlu0 2
  %405 = vperm.xlu0 %404, %v30
  %v406 = vpop.permute.xlu0 %405
  %408 = vset.pattern.permute.xlu0 2
  %409 = vperm.xlu0 %408, %v31
  %v410 = vpop.permute.xlu0 %409
  %412 = vset.pattern.permute.xlu0 2
  %413 = vperm.xlu0 %412, %v32
  %v414 = vpop.permute.xlu0 %413
  %416 = vset.pattern.permute.xlu0 2
  %417 = vperm.xlu0 %416, %v33
  %v418 = vpop.permute.xlu0 %417
  %v420 = vperm.slane %v17, 2
  %v421 = vmul.f32 %v358, %v420
  %v422 = vmul.f32 %v362, %v420
  %v423 = vmul.f32 %v366, %v420
  %v424 = vmul.f32 %v370, %v420
  %v425 = vmul.f32 %v374, %v420
  %v426 = vmul.f32 %v378, %v420
  %v427 = vmul.f32 %v382, %v420
  %v428 = vmul.f32 %v386, %v420
  %v429 = vmul.f32 %v390, %v420
  %v430 = vmul.f32 %v394, %v420
  %v431 = vmul.f32 %v398, %v420
  %v432 = vmul.f32 %v402, %v420
  %v433 = vmul.f32 %v406, %v420
  %v434 = vmul.f32 %v410, %v420
  %v435 = vmul.f32 %v414, %v420
  %v436 = vmul.f32 %v418, %v420
  %v437 = vadd.f32 %v340, %v421
  %v438 = vadd.f32 %v341, %v422
  %v439 = vadd.f32 %v342, %v423
  %v440 = vadd.f32 %v343, %v424
  %v441 = vadd.f32 %v344, %v425
  %v442 = vadd.f32 %v345, %v426
  %v443 = vadd.f32 %v346, %v427
  %v444 = vadd.f32 %v347, %v428
  %v445 = vadd.f32 %v348, %v429
  %v446 = vadd.f32 %v349, %v430
  %v447 = vadd.f32 %v350, %v431
  %v448 = vadd.f32 %v351, %v432
  %v449 = vadd.f32 %v352, %v433
  %v450 = vadd.f32 %v353, %v434
  %v451 = vadd.f32 %v354, %v435
  %v452 = vadd.f32 %v355, %v436
  %v453 = vmax.f32 %v437, 0.0
  %v454 = vmax.f32 %v438, 0.0
  %v455 = vmax.f32 %v439, 0.0
  %v456 = vmax.f32 %v440, 0.0
  %v457 = vmax.f32 %v441, 0.0
  %v458 = vmax.f32 %v442, 0.0
  %v459 = vmax.f32 %v443, 0.0
  %v460 = vmax.f32 %v444, 0.0
  %v461 = vmax.f32 %v445, 0.0
  %v462 = vmax.f32 %v446, 0.0
  %v463 = vmax.f32 %v447, 0.0
  %v464 = vmax.f32 %v448, 0.0
  %v465 = vmax.f32 %v449, 0.0
  %v466 = vmax.f32 %v450, 0.0
  %v467 = vmax.f32 %v451, 0.0
  %v468 = vmax.f32 %v452, 0.0
  %469 = vset.pattern.permute.xlu0 1
  %470 = vperm.xlu0 %469, %v50
  %v471 = vpop.permute.xlu0 %470
  %473 = vset.pattern.permute.xlu0 1
  %474 = vperm.xlu0 %473, %v51
  %v475 = vpop.permute.xlu0 %474
  %477 = vset.pattern.permute.xlu0 1
  %478 = vperm.xlu0 %477, %v52
  %v479 = vpop.permute.xlu0 %478
  %481 = vset.pattern.permute.xlu0 1
  %482 = vperm.xlu0 %481, %v53
  %v483 = vpop.permute.xlu0 %482
  %485 = vset.pattern.permute.xlu0 1
  %486 = vperm.xlu0 %485, %v54
  %v487 = vpop.permute.xlu0 %486
  %489 = vset.pattern.permute.xlu0 1
  %490 = vperm.xlu0 %489, %v55
  %v491 = vpop.permute.xlu0 %490
  %493 = vset.pattern.permute.xlu0 1
  %494 = vperm.xlu0 %493, %v56
  %v495 = vpop.permute.xlu0 %494
  %497 = vset.pattern.permute.xlu0 1
  %498 = vperm.xlu0 %497, %v57
  %v499 = vpop.permute.xlu0 %498
  %501 = vset.pattern.permute.xlu0 1
  %502 = vperm.xlu0 %501, %v58
  %v503 = vpop.permute.xlu0 %502
  %505 = vset.pattern.permute.xlu0 1
  %506 = vperm.xlu0 %505, %v59
  %v507 = vpop.permute.xlu0 %506
  %509 = vset.pattern.permute.xlu0 1
  %510 = vperm.xlu0 %509, %v60
  %v511 = vpop.permute.xlu0 %510
  %513 = vset.pattern.permute.xlu0 1
  %514 = vperm.xlu0 %513, %v61
  %v515 = vpop.permute.xlu0 %514
  %517 = vset.pattern.permute.xlu0 1
  %518 = vperm.xlu0 %517, %v62
  %v519 = vpop.permute.xlu0 %518
  %521 = vset.pattern.permute.xlu0 1
  %522 = vperm.xlu0 %521, %v63
  %v523 = vpop.permute.xlu0 %522
  %525 = vset.pattern.permute.xlu0 1
  %526 = vperm.xlu0 %525, %v64
  %v527 = vpop.permute.xlu0 %526
  %529 = vset.pattern.permute.xlu0 1
  %530 = vperm.xlu0 %529, %v65
  %v531 = vpop.permute.xlu0 %530
  %533 = vmatpush.msra.mxu0 %v468
  %534 = vmatpush.msra.mxu0 %v467
  %535 = vmatpush.msra.mxu0 %v466
  %536 = vmatpush.msra.mxu0 %v465
  %537 = vmatpush.msra.mxu0 %v464
  %538 = vmatpush.msra.mxu0 %v463
  %539 = vmatpush.msra.mxu0 %v462
  %540 = vmatpush.msra.mxu0 %v461
  %541 = vmatpush.msra.mxu0 %v460
  %542 = vmatpush.msra.mxu0 %v459
  %543 = vmatpush.msra.mxu0 %v458
  %544 = vmatpush.msra.mxu0 %v457
  %545 = vmatpush.msra.mxu0 %v456
  %546 = vmatpush.msra.mxu0 %v455
  %547 = vmatpush.msra.mxu0 %v454
  %548 = vmatpush.msra.mxu0 %v453
  %549 = vmatmul.f32.gmra.mxu0 %v34
  %v550 = vpop.f32.mrf.mxu0
  %v551 = vadd.f32 %v471, %v550
  %552 = vmatmul.f32.gmra.mxu0 %v35
  %v553 = vpop.f32.mrf.mxu0
  %v554 = vadd.f32 %v475, %v553
  %555 = vmatmul.f32.gmra.mxu0 %v36
  %v556 = vpop.f32.mrf.mxu0
  %v557 = vadd.f32 %v479, %v556
  %558 = vmatmul.f32.gmra.mxu0 %v37
  %v559 = vpop.f32.mrf.mxu0
  %v560 = vadd.f32 %v483, %v559
  %561 = vmatmul.f32.gmra.mxu0 %v38
  %v562 = vpop.f32.mrf.mxu0
  %v563 = vadd.f32 %v487, %v562
  %564 = vmatmul.f32.gmra.mxu0 %v39
  %v565 = vpop.f32.mrf.mxu0
  %v566 = vadd.f32 %v491, %v565
  %567 = vmatmul.f32.gmra.mxu0 %v40
  %v568 = vpop.f32.mrf.mxu0
  %v569 = vadd.f32 %v495, %v568
  %570 = vmatmul.f32.gmra.mxu0 %v41
  %v571 = vpop.f32.mrf.mxu0
  %v572 = vadd.f32 %v499, %v571
  %573 = vmatmul.f32.gmra.mxu0 %v42
  %v574 = vpop.f32.mrf.mxu0
  %v575 = vadd.f32 %v503, %v574
  %576 = vmatmul.f32.gmra.mxu0 %v43
  %v577 = vpop.f32.mrf.mxu0
  %v578 = vadd.f32 %v507, %v577
  %579 = vmatmul.f32.gmra.mxu0 %v44
  %v580 = vpop.f32.mrf.mxu0
  %v581 = vadd.f32 %v511, %v580
  %582 = vmatmul.f32.gmra.mxu0 %v45
  %v583 = vpop.f32.mrf.mxu0
  %v584 = vadd.f32 %v515, %v583
  %585 = vmatmul.f32.gmra.mxu0 %v46
  %v586 = vpop.f32.mrf.mxu0
  %v587 = vadd.f32 %v519, %v586
  %588 = vmatmul.f32.gmra.mxu0 %v47
  %v589 = vpop.f32.mrf.mxu0
  %v590 = vadd.f32 %v523, %v589
  %591 = vmatmul.f32.gmra.mxu0 %v48
  %v592 = vpop.f32.mrf.mxu0
  %v593 = vadd.f32 %v527, %v592
  %594 = vmatmul.f32.gmra.mxu0 %v49
  %v595 = vpop.f32.mrf.mxu0
  %v596 = vadd.f32 %v531, %v595
  %597 = vdwg.mxu0
  %v598 = vmax.f32 %v551, 0.0
  %v599 = vmax.f32 %v554, 0.0
  %v600 = vmax.f32 %v557, 0.0
  %v601 = vmax.f32 %v560, 0.0
  %v602 = vmax.f32 %v563, 0.0
  %v603 = vmax.f32 %v566, 0.0
  %v604 = vmax.f32 %v569, 0.0
  %v605 = vmax.f32 %v572, 0.0
  %v606 = vmax.f32 %v575, 0.0
  %v607 = vmax.f32 %v578, 0.0
  %v608 = vmax.f32 %v581, 0.0
  %v609 = vmax.f32 %v584, 0.0
  %v610 = vmax.f32 %v587, 0.0
  %v611 = vmax.f32 %v590, 0.0
  %v612 = vmax.f32 %v593, 0.0
  %v613 = vmax.f32 %v596, 0.0
  %614 = vset.pattern.permute.xlu0 2
  %615 = vperm.xlu0 %614, %v50
  %v616 = vpop.permute.xlu0 %615
  %618 = vset.pattern.permute.xlu0 2
  %619 = vperm.xlu0 %618, %v51
  %v620 = vpop.permute.xlu0 %619
  %622 = vset.pattern.permute.xlu0 2
  %623 = vperm.xlu0 %622, %v52
  %v624 = vpop.permute.xlu0 %623
  %626 = vset.pattern.permute.xlu0 2
  %627 = vperm.xlu0 %626, %v53
  %v628 = vpop.permute.xlu0 %627
  %630 = vset.pattern.permute.xlu0 2
  %631 = vperm.xlu0 %630, %v54
  %v632 = vpop.permute.xlu0 %631
  %634 = vset.pattern.permute.xlu0 2
  %635 = vperm.xlu0 %634, %v55
  %v636 = vpop.permute.xlu0 %635
  %638 = vset.pattern.permute.xlu0 2
  %639 = vperm.xlu0 %638, %v56
  %v640 = vpop.permute.xlu0 %639
  %642 = vset.pattern.permute.xlu0 2
  %643 = vperm.xlu0 %642, %v57
  %v644 = vpop.permute.xlu0 %643
  %646 = vset.pattern.permute.xlu0 2
  %647 = vperm.xlu0 %646, %v58
  %v648 = vpop.permute.xlu0 %647
  %650 = vset.pattern.permute.xlu0 2
  %651 = vperm.xlu0 %650, %v59
  %v652 = vpop.permute.xlu0 %651
  %654 = vset.pattern.permute.xlu0 2
  %655 = vperm.xlu0 %654, %v60
  %v656 = vpop.permute.xlu0 %655
  %658 = vset.pattern.permute.xlu0 2
  %659 = vperm.xlu0 %658, %v61
  %v660 = vpop.permute.xlu0 %659
  %662 = vset.pattern.permute.xlu0 2
  %663 = vperm.xlu0 %662, %v62
  %v664 = vpop.permute.xlu0 %663
  %666 = vset.pattern.permute.xlu0 2
  %667 = vperm.xlu0 %666, %v63
  %v668 = vpop.permute.xlu0 %667
  %670 = vset.pattern.permute.xlu0 2
  %671 = vperm.xlu0 %670, %v64
  %v672 = vpop.permute.xlu0 %671
  %674 = vset.pattern.permute.xlu0 2
  %675 = vperm.xlu0 %674, %v65
  %v676 = vpop.permute.xlu0 %675
  %v678 = vmul.f32 %v598, %v616
  %v679 = vmul.f32 %v599, %v620
  %v680 = vmul.f32 %v600, %v624
  %v681 = vmul.f32 %v601, %v628
  %v682 = vmul.f32 %v602, %v632
  %v683 = vmul.f32 %v603, %v636
  %v684 = vmul.f32 %v604, %v640
  %v685 = vmul.f32 %v605, %v644
  %v686 = vmul.f32 %v606, %v648
  %v687 = vmul.f32 %v607, %v652
  %v688 = vmul.f32 %v608, %v656
  %v689 = vmul.f32 %v609, %v660
  %v690 = vmul.f32 %v610, %v664
  %v691 = vmul.f32 %v611, %v668
  %v692 = vmul.f32 %v612, %v672
  %v693 = vmul.f32 %v613, %v676
  %v694 = vadd.f32 %v678, %v679
  %v695 = vadd.f32 %v694, %v680
  %v696 = vadd.f32 %v695, %v681
  %v697 = vadd.f32 %v696, %v682
  %v698 = vadd.f32 %v697, %v683
  %v699 = vadd.f32 %v698, %v684
  %v700 = vadd.f32 %v699, %v685
  %v701 = vadd.f32 %v700, %v686
  %v702 = vadd.f32 %v701, %v687
  %v703 = vadd.f32 %v702, %v688
  %v704 = vadd.f32 %v703, %v689
  %v705 = vadd.f32 %v704, %v690
  %v706 = vadd.f32 %v705, %v691
  %v707 = vadd.f32 %v706, %v692
  %v708 = vadd.f32 %v707, %v693
  %v709 = vrot.slane %v708, 4
  %v710 = vadd.f32 %v708, %v709
  %v711 = vrot.slane %v710, 2
  %v712 = vadd.f32 %v710, %v711
  %v713 = vrot.slane %v712, 1
  %v714 = vadd.f32 %v712, %v713
  %715 = vset.pattern.permute.xlu0 3
  %716 = vperm.xlu0 %715, %v50
  %v717 = vpop.permute.xlu0 %716
  %v719 = vadd.f32 %v714, %v717
  %720 = vst [vmem:[%s4] sm:$0x1] %v719
  // Predicated region
  $region18: #{value_network_forward.1} parent=0 // pred_check
    _
  $region19: #{value_network_forward.1} parent=0 // pred_check_branch
    %722 = sbr.rel (0) target = $region21
  $region20: #{value_network_forward.1} parent=0 // pred_region
    _
  $region21: #{value_network_forward.1} parent=0 // pred_fallthru
    _
  // Predicated region
  $region22: #{value_network_forward.1} parent=0 // pred_check
    _
  $region23: #{value_network_forward.1} parent=0 // pred_check_branch
    %724 = sbr.rel (0) target = $region25
  $region24: #{value_network_forward.1} parent=0 // pred_region
    _
  $region25: #{value_network_forward.1} parent=0 // pred_fallthru
    _

</llo_original>
